<compile_context>
chip_gen: v5e
topology: v5e:2x2
jax: 0.10.0
libtpu: 0.0.40
codegen_flags: <defaults>
</compile_context>

<pallas_src>
import jax
import jax.numpy as jnp
from jax.experimental import pallas as pl
from jax.experimental.pallas import tpu as pltpu


LANE = 128
SUBLANE = 8


def critic_kernel(x_ref,
                  w1_ref, b1_ref,
                  w2_ref, b2_ref,
                  w3_ref, b3_ref,
                  w4_ref, b4_ref,
                  out_ref):
    # x: [8, TB] feature-major state tile (rows 4..7 are zero padding).
    x = x_ref[...]

    # layer 1: Linear(4 -> 64) + ReLU   (K padded 4 -> 8 with zeros; exact)
    h = jnp.dot(w1_ref[...], x, preferred_element_type=jnp.float32)      # [64, TB]
    h = jnp.maximum(h + b1_ref[...], 0.0)

    # layer 2: Linear(64 -> 256) + ReLU (matmul operands optionally bf16,
    # accumulation f32; bias/ReLU always f32)
    w2 = w2_ref[...]
    h = jnp.dot(w2, h.astype(w2.dtype), preferred_element_type=jnp.float32)  # [256, TB]
    h = jnp.maximum(h + b2_ref[...], 0.0)

    # layer 3: Linear(256 -> 256) + ReLU
    w3 = w3_ref[...]
    h = jnp.dot(w3, h.astype(w3.dtype), preferred_element_type=jnp.float32)  # [256, TB]
    h = jnp.maximum(h + b3_ref[...], 0.0)

    # layer 4: Linear(256 -> 1) -> naturally lane-dense [1, TB] value row.
    w4 = w4_ref[...]
    v = jnp.dot(w4, h.astype(w4.dtype), preferred_element_type=jnp.float32)  # [1, TB]
    out_ref[...] = v + b4_ref[...]


def _round_up(n, m):
    return ((n + m - 1) // m) * m


def pack_params(params, matmul_dtype=jnp.float32):
    """One-time packing into the kernel layout (feature-major):
         w_l stored as [out_features, in_features]; biases as [out_features, 1].
         w1: [4,64] -> transposed + contraction padded -> [64, 8]   (exact)
         w2/w3/w4 optionally cast to `matmul_dtype` (bf16) for the MXU path;
         w1 and all biases stay float32.
    `params` is the math layout: list of (w [in,out], b [1,out])."""
    (w1, b1), (w2, b2), (w3, b3), (w4, b4) = params
    w1p = jnp.pad(w1, ((0, SUBLANE - w1.shape[0]), (0, 0))).T.astype(jnp.float32)  # [64, 8]
    return (w1p, b1.T.astype(jnp.float32),
            w2.T.astype(matmul_dtype), b2.T.astype(jnp.float32),
            w3.T.astype(matmul_dtype), b3.T.astype(jnp.float32),
            w4.T.astype(matmul_dtype), b4.T.astype(jnp.float32))


def critic_forward(state, packed_params, *, tb=1024):
    """state: [B, 4] float32 -> value: [B, 1] float32."""
    B, F = state.shape
    w1p, b1, w2, b2, w3, b3, w4, b4 = packed_params
    k_pad = w1p.shape[1]  # 8

    # Batch lives on the lane axis -> tile must be a multiple of 128.
    tb = _round_up(tb, LANE)
    b128 = _round_up(B, LANE)
    # Keep >= 2 grid steps when the padded batch allows, so v7x's two
    # TensorCores both get work on the "parallel" batch axis.
    half = _round_up(max(b128 // 2, 1), LANE)
    tb_eff = min(tb, max(LANE, half))
    b_pad = _round_up(B, tb_eff)
    grid = (b_pad // tb_eff,)

    # Transpose once to feature-major [k_pad, b_pad] (zero-padded; exact).
    x = jnp.pad(state.T, ((0, k_pad - F), (0, b_pad - B)))

    const = lambda shp: pl.BlockSpec(shp, lambda i: (0, 0))  # VMEM-resident

    # Advisory cost estimate for XLA scheduling around the kernel.
    flops = 2 * b_pad * (k_pad * 64 + 64 * 256 + 256 * 256 + 256 * 1)
    param_bytes = sum(int(p.size) * p.dtype.itemsize for p in packed_params)
    bytes_accessed = int(x.size) * x.dtype.itemsize + param_bytes + int(b_pad) * 4
    cost = pl.CostEstimate(flops=flops, transcendentals=0,
                           bytes_accessed=bytes_accessed)

    out = pl.pallas_call(
        critic_kernel,
        out_shape=jax.ShapeDtypeStruct((1, b_pad), jnp.float32),
        grid=grid,
        in_specs=[
            pl.BlockSpec((k_pad, tb_eff), lambda i: (0, i)),   # state tile [8, TB]
            const(w1p.shape), const(b1.shape),
            const(w2.shape), const(b2.shape),
            const(w3.shape), const(b3.shape),
            const(w4.shape), const(b4.shape),
        ],
        out_specs=pl.BlockSpec((1, tb_eff), lambda i: (0, i)),  # lane-dense [1, TB]
        compiler_params=pltpu.CompilerParams(
            dimension_semantics=("parallel",)),
        cost_estimate=cost,
    )(x, w1p, b1, w2, b2, w3, b3, w4, b4)

    # Drop batch padding and restore [B, 1].
    return out[0, :B][:, None]


def init_params(key):
    """Deterministic synthetic parameters matching PyTorch Linear default init
    (uniform(-1/sqrt(fan_in), 1/sqrt(fan_in)) for both weight and bias).
    Math layout: w [in, out], b [1, out]."""
    dims = [(4, 64), (64, 256), (256, 256), (256, 1)]
    params = []
    for (fan_in, fan_out) in dims:
        key, kw, kb = jax.random.split(key, 3)
        bound = 1.0 / jnp.sqrt(jnp.float32(fan_in))
        w = jax.random.uniform(kw, (fan_in, fan_out), jnp.float32, -bound, bound)
        b = jax.random.uniform(kb, (1, fan_out), jnp.float32, -bound, bound)
        params.append((w, b))
    return params


def reference_forward(state, params):
    h = state
    for i, (w, b) in enumerate(params):
        h = h @ w + b
        if i < len(params) - 1:
            h = jnp.maximum(h, 0.0)
    return h


if __name__ == "__main__":
    key = jax.random.PRNGKey(0)
    k_params, k_state1, k_state2 = jax.random.split(key, 3)

    params = init_params(k_params)
    packed = pack_params(params)  # one-time packing; weights stay in this layout

    # Small batch (single tile, lanes padded to 128).
    B1 = 8
    state1 = jax.random.normal(k_state1, (B1, 4), dtype=jnp.float32)
    value1 = jax.block_until_ready(critic_forward(state1, packed))
    ref1 = reference_forward(state1, params)
    assert value1.shape == (B1, 1), value1.shape
    assert jnp.allclose(value1, ref1, atol=1e-5, rtol=1e-5)

    # Non-aligned batch exercising the tiled path (grid >= 2, batch padding).
    B2 = 300
    state2 = jax.random.normal(k_state2, (B2, 4), dtype=jnp.float32)
    value2 = jax.block_until_ready(critic_forward(state2, packed, tb=1024))
    ref2 = reference_forward(state2, params)
    assert value2.shape == (B2, 1), value2.shape
    assert jnp.allclose(value2, ref2, atol=1e-5, rtol=1e-5)

    # Optional bf16-matmul path (f32 accumulation); loose numerical tolerance.
    packed_bf16 = pack_params(params, matmul_dtype=jnp.bfloat16)
    value2_bf16 = jax.block_until_ready(critic_forward(state2, packed_bf16, tb=1024))
    assert value2_bf16.shape == (B2, 1), value2_bf16.shape
    assert float(jnp.max(jnp.abs(value2_bf16 - ref2))) < 5e-2

    print("KERNEL_OK")
</pallas_src>

<mosaic_0001>
module attributes {stable_mosaic.version = 11 : i64} {
  func.func @critic_kernel(%arg0: i32, %arg1: memref<8x128xf32, #tpu.memory_space<vmem>>, %arg2: memref<64x8xf32, #tpu.memory_space<vmem>>, %arg3: memref<64x1xf32, #tpu.memory_space<vmem>>, %arg4: memref<256x64xf32, #tpu.memory_space<vmem>>, %arg5: memref<256x1xf32, #tpu.memory_space<vmem>>, %arg6: memref<256x256xf32, #tpu.memory_space<vmem>>, %arg7: memref<256x1xf32, #tpu.memory_space<vmem>>, %arg8: memref<1x256xf32, #tpu.memory_space<vmem>>, %arg9: memref<1x1xf32, #tpu.memory_space<vmem>>, %arg10: memref<1x128xf32, #tpu.memory_space<vmem>>) attributes {dimension_semantics = [#tpu.dimension_semantics<parallel>], iteration_bounds = array<i64: 1>, scalar_prefetch = 0 : i64, scratch_operands = 0 : i64, tpu.core_type = #tpu.core_type<tc>, window_params = [{transform_indices = @transform_0, window_bounds = array<i64: 8, 128>}, {pipeline_mode = #tpu.pipeline_mode<synchronous>, transform_indices = @transform_1, window_bounds = array<i64: 64, 8>}, {pipeline_mode = #tpu.pipeline_mode<synchronous>, transform_indices = @transform_2, window_bounds = array<i64: 64, 1>}, {pipeline_mode = #tpu.pipeline_mode<synchronous>, transform_indices = @transform_3, window_bounds = array<i64: 256, 64>}, {pipeline_mode = #tpu.pipeline_mode<synchronous>, transform_indices = @transform_4, window_bounds = array<i64: 256, 1>}, {pipeline_mode = #tpu.pipeline_mode<synchronous>, transform_indices = @transform_5, window_bounds = array<i64: 256, 256>}, {pipeline_mode = #tpu.pipeline_mode<synchronous>, transform_indices = @transform_6, window_bounds = array<i64: 256, 1>}, {pipeline_mode = #tpu.pipeline_mode<synchronous>, transform_indices = @transform_7, window_bounds = array<i64: 1, 256>}, {pipeline_mode = #tpu.pipeline_mode<synchronous>, transform_indices = @transform_8, window_bounds = array<i64: 1, 1>}, {transform_indices = @transform_9, window_bounds = array<i64: 1, 128>}]} {
    %c0 = arith.constant 0 : index
    %c0_0 = arith.constant 0 : index
    %0 = vector.load %arg1[%c0, %c0_0] : memref<8x128xf32, #tpu.memory_space<vmem>>, vector<8x128xf32>
    %c0_1 = arith.constant 0 : index
    %c0_2 = arith.constant 0 : index
    %1 = vector.load %arg2[%c0_1, %c0_2] : memref<64x8xf32, #tpu.memory_space<vmem>>, vector<64x8xf32>
    %cst = arith.constant dense<0.000000e+00> : vector<64x128xf32>
    %2 = tpu.matmul %1, %0, %cst {dimension_numbers = #tpu.dot_dimension_numbers<[1], [0], [0], [1], [0, 0, 1, 1], [], []>} : vector<64x8xf32>, vector<8x128xf32>, vector<64x128xf32> -> vector<64x128xf32>
    %c0_3 = arith.constant 0 : index
    %c0_4 = arith.constant 0 : index
    %3 = vector.load %arg3[%c0_3, %c0_4] : memref<64x1xf32, #tpu.memory_space<vmem>>, vector<64x1xf32>
    %4 = vector.broadcast %3 : vector<64x1xf32> to vector<64x128xf32>
    %5 = arith.addf %2, %4 : vector<64x128xf32>
    %cst_5 = arith.constant 0.000000e+00 : f32
    %6 = vector.broadcast %cst_5 : f32 to vector<64x128xf32>
    %7 = arith.maximumf %5, %6 : vector<64x128xf32>
    %c0_6 = arith.constant 0 : index
    %c0_7 = arith.constant 0 : index
    %8 = vector.load %arg4[%c0_6, %c0_7] : memref<256x64xf32, #tpu.memory_space<vmem>>, vector<256x64xf32>
    %cst_8 = arith.constant dense<0.000000e+00> : vector<256x128xf32>
    %9 = tpu.matmul %8, %7, %cst_8 {dimension_numbers = #tpu.dot_dimension_numbers<[1], [0], [0], [1], [0, 0, 1, 1], [], []>} : vector<256x64xf32>, vector<64x128xf32>, vector<256x128xf32> -> vector<256x128xf32>
    %c0_9 = arith.constant 0 : index
    %c0_10 = arith.constant 0 : index
    %10 = vector.load %arg5[%c0_9, %c0_10] : memref<256x1xf32, #tpu.memory_space<vmem>>, vector<256x1xf32>
    %11 = vector.broadcast %10 : vector<256x1xf32> to vector<256x128xf32>
    %12 = arith.addf %9, %11 : vector<256x128xf32>
    %cst_11 = arith.constant 0.000000e+00 : f32
    %13 = vector.broadcast %cst_11 : f32 to vector<256x128xf32>
    %14 = arith.maximumf %12, %13 : vector<256x128xf32>
    %c0_12 = arith.constant 0 : index
    %c0_13 = arith.constant 0 : index
    %15 = vector.load %arg6[%c0_12, %c0_13] : memref<256x256xf32, #tpu.memory_space<vmem>>, vector<256x256xf32>
    %cst_14 = arith.constant dense<0.000000e+00> : vector<256x128xf32>
    %16 = tpu.matmul %15, %14, %cst_14 {dimension_numbers = #tpu.dot_dimension_numbers<[1], [0], [0], [1], [0, 0, 1, 1], [], []>} : vector<256x256xf32>, vector<256x128xf32>, vector<256x128xf32> -> vector<256x128xf32>
    %c0_15 = arith.constant 0 : index
    %c0_16 = arith.constant 0 : index
    %17 = vector.load %arg7[%c0_15, %c0_16] : memref<256x1xf32, #tpu.memory_space<vmem>>, vector<256x1xf32>
    %18 = vector.broadcast %17 : vector<256x1xf32> to vector<256x128xf32>
    %19 = arith.addf %16, %18 : vector<256x128xf32>
    %cst_17 = arith.constant 0.000000e+00 : f32
    %20 = vector.broadcast %cst_17 : f32 to vector<256x128xf32>
    %21 = arith.maximumf %19, %20 : vector<256x128xf32>
    %c0_18 = arith.constant 0 : index
    %c0_19 = arith.constant 0 : index
    %22 = vector.load %arg8[%c0_18, %c0_19] : memref<1x256xf32, #tpu.memory_space<vmem>>, vector<1x256xf32>
    %cst_20 = arith.constant dense<0.000000e+00> : vector<1x128xf32>
    %23 = tpu.matmul %22, %21, %cst_20 {dimension_numbers = #tpu.dot_dimension_numbers<[1], [0], [0], [1], [0, 0, 1, 1], [], []>} : vector<1x256xf32>, vector<256x128xf32>, vector<1x128xf32> -> vector<1x128xf32>
    %c0_21 = arith.constant 0 : index
    %c0_22 = arith.constant 0 : index
    %24 = vector.load %arg9[%c0_21, %c0_22] : memref<1x1xf32, #tpu.memory_space<vmem>>, vector<1x1xf32>
    %25 = vector.broadcast %24 : vector<1x1xf32> to vector<1x128xf32>
    %26 = arith.addf %23, %25 : vector<1x128xf32>
    %c0_23 = arith.constant 0 : index
    %c0_24 = arith.constant 0 : index
    %27 = vector.load %arg10[%c0_23, %c0_24] : memref<1x128xf32, #tpu.memory_space<vmem>>, vector<1x128xf32>
    tpu.vector_store %arg10[%c0_23, %c0_24], %26 {strides = array<i32>} : memref<1x128xf32, #tpu.memory_space<vmem>>, vector<1x128xf32>,
    return
  }
  func.func @transform_0(%arg0: i32) -> (i32, i32) {
    %c0_i32 = arith.constant 0 : i32
    %c0_i32_0 = arith.constant 0 : i32
    return %c0_i32, %arg0 : i32, i32
  }
  func.func @transform_1(%arg0: i32) -> (i32, i32) {
    %c0_i32 = arith.constant 0 : i32
    %c0_i32_0 = arith.constant 0 : i32
    %c0_i32_1 = arith.constant 0 : i32
    return %c0_i32, %c0_i32_0 : i32, i32
  }
  func.func @transform_2(%arg0: i32) -> (i32, i32) {
    %c0_i32 = arith.constant 0 : i32
    %c0_i32_0 = arith.constant 0 : i32
    %c0_i32_1 = arith.constant 0 : i32
    return %c0_i32, %c0_i32_0 : i32, i32
  }
  func.func @transform_3(%arg0: i32) -> (i32, i32) {
    %c0_i32 = arith.constant 0 : i32
    %c0_i32_0 = arith.constant 0 : i32
    %c0_i32_1 = arith.constant 0 : i32
    return %c0_i32, %c0_i32_0 : i32, i32
  }
  func.func @transform_4(%arg0: i32) -> (i32, i32) {
    %c0_i32 = arith.constant 0 : i32
    %c0_i32_0 = arith.constant 0 : i32
    %c0_i32_1 = arith.constant 0 : i32
    return %c0_i32, %c0_i32_0 : i32, i32
  }
  func.func @transform_5(%arg0: i32) -> (i32, i32) {
    %c0_i32 = arith.constant 0 : i32
    %c0_i32_0 = arith.constant 0 : i32
    %c0_i32_1 = arith.constant 0 : i32
    return %c0_i32, %c0_i32_0 : i32, i32
  }
  func.func @transform_6(%arg0: i32) -> (i32, i32) {
    %c0_i32 = arith.constant 0 : i32
    %c0_i32_0 = arith.constant 0 : i32
    %c0_i32_1 = arith.constant 0 : i32
    return %c0_i32, %c0_i32_0 : i32, i32
  }
  func.func @transform_7(%arg0: i32) -> (i32, i32) {
    %c0_i32 = arith.constant 0 : i32
    %c0_i32_0 = arith.constant 0 : i32
    %c0_i32_1 = arith.constant 0 : i32
    return %c0_i32, %c0_i32_0 : i32, i32
  }
  func.func @transform_8(%arg0: i32) -> (i32, i32) {
    %c0_i32 = arith.constant 0 : i32
    %c0_i32_0 = arith.constant 0 : i32
    %c0_i32_1 = arith.constant 0 : i32
    return %c0_i32, %c0_i32_0 : i32, i32
  }
  func.func @transform_9(%arg0: i32) -> (i32, i32) {
    %c0_i32 = arith.constant 0 : i32
    %c0_i32_0 = arith.constant 0 : i32
    return %c0_i32, %arg0 : i32, i32
  }
}

</mosaic_0001>

<llo_original>
// kernel: tpu_custom_call.1
$region0: #{tpu_custom_call.1}
  #allocation0 [shape = 'u32[]', space=smem, size = 0x4, offset = 0x4, fixed_abs, tag = 'smem constant byte address 0x4 - core index']
  #allocation1 [shape = 'u32[72,128]{1,0:T(1,128)}', space=vmem, size = 0x9000, scoped, tag = 'internal scratch']
  #allocation2 [shape = 'f32[1,1]{1,0:T(1,128)S(1)}', space=vmem, size = 0x200, scoped, tag = 'scoped memory for tpu_custom_call.1']
  %s0 = inlined_call_operand.vmem [shape: f32[8,128], index: 0, kind: input, shape index: {}]
  %s1 = inlined_call_operand.vmem [shape: f32[64,8], index: 1, kind: input, shape index: {}]
  %s2 = inlined_call_operand.vmem [shape: f32[64,1], index: 2, kind: input, shape index: {}]
  %s3 = inlined_call_operand.vmem [shape: f32[256,64], index: 3, kind: input, shape index: {}]
  %s4 = inlined_call_operand.vmem [shape: f32[256,1], index: 4, kind: input, shape index: {}]
  %s5 = inlined_call_operand.vmem [shape: f32[256,256], index: 5, kind: input, shape index: {}]
  %s6 = inlined_call_operand.vmem [shape: f32[256,1], index: 6, kind: input, shape index: {}]
  %s7 = inlined_call_operand.vmem [shape: f32[1,256], index: 7, kind: input, shape index: {}]
  %s8 = inlined_call_operand.<no memory space> [shape: f32[1,1], index: 8, kind: input, shape index: {}]
  %s9 = inlined_call_operand.hbm [shape: f32[1,128], index: 9, kind: output, shape index: {}]
  %s10 = sld [smem:[#allocation0]]
  $region46: #{tpu_custom_call.1} parent=0
    _
  %s12 = ssub.s32 1, %s10
  %s13 = scalar_select 0, %s12, %s10
  %v14 = vstv %s8
  %15 = vst [vmem:[#allocation2] sm:$0x1] %v14
  $region1: #{tpu_custom_call.1} parent=0
    #allocation3 [shape = 'u8[512]{0}', space=vmem, size = 0x400, scoped, tag = 'output window, operand 0, single buffered']
    #allocation4 [shape = 's32[1]{0}', space=sflag, size = 0x4, scoped, tag = 'scoped memory for tpu_custom_call.1']
    %16 = vsyncpa [#allocation4], 0
    // Predicated region
    $region2: #{tpu_custom_call.1} parent=1 // pred_check
      _
    $region3: #{tpu_custom_call.1} parent=1 // pred_check_branch
      %18 = sbr.rel (0) target = $region5
    $region4: #{tpu_custom_call.1} parent=1 // pred_region
      _
    $region5: #{tpu_custom_call.1} parent=1 // pred_fallthru
      _
    // Predicated region
    $region6: #{tpu_custom_call.1} parent=1 // pred_check
      _
    $region7: #{tpu_custom_call.1} parent=1 // pred_check_branch
      %20 = sbr.rel (0) target = $region9
    $region8: #{tpu_custom_call.1} parent=1 // pred_region
      _
    $region9: #{tpu_custom_call.1} parent=1 // pred_fallthru
      _
    // Predicated region
    $region10: #{tpu_custom_call.1} parent=1 // pred_check
      _
    $region11: #{tpu_custom_call.1} parent=1 // pred_check_branch
      %22 = sbr.rel (0) target = $region13
    $region12: #{tpu_custom_call.1} parent=1 // pred_region
      _
    $region13: #{tpu_custom_call.1} parent=1 // pred_fallthru
      _
    // Predicated region
    $region14: #{tpu_custom_call.1} parent=1 // pred_check
      _
    $region15: #{tpu_custom_call.1} parent=1 // pred_check_branch
      %24 = sbr.rel (0) target = $region17
    $region16: #{tpu_custom_call.1} parent=1 // pred_region
      _
    $region17: #{tpu_custom_call.1} parent=1 // pred_fallthru
      _
    // Predicated region
    $region18: #{tpu_custom_call.1} parent=1 // pred_check
      _
    $region19: #{tpu_custom_call.1} parent=1 // pred_check_branch
      %26 = sbr.rel (0) target = $region21
    $region20: #{tpu_custom_call.1} parent=1 // pred_region
      _
    $region21: #{tpu_custom_call.1} parent=1 // pred_fallthru
      _
    // Predicated region
    $region22: #{tpu_custom_call.1} parent=1 // pred_check
      _
    $region23: #{tpu_custom_call.1} parent=1 // pred_check_branch
      %28 = sbr.rel (0) target = $region25
    $region24: #{tpu_custom_call.1} parent=1 // pred_region
      _
    $region25: #{tpu_custom_call.1} parent=1 // pred_fallthru
      _
    // Predicated region
    $region26: #{tpu_custom_call.1} parent=1 // pred_check
      _
    $region27: #{tpu_custom_call.1} parent=1 // pred_check_branch
      %30 = sbr.rel (0) target = $region29
    $region28: #{tpu_custom_call.1} parent=1 // pred_region
      _
    $region29: #{tpu_custom_call.1} parent=1 // pred_fallthru
      _
    // Predicated region
    $region30: #{tpu_custom_call.1} parent=1 // pred_check
      _
    $region31: #{tpu_custom_call.1} parent=1 // pred_check_branch
      %32 = sbr.rel (0) target = $region33
    $region32: #{tpu_custom_call.1} parent=1 // pred_region
      _
    $region33: #{tpu_custom_call.1} parent=1 // pred_fallthru
      _
    // Predicated region
    $region34: #{tpu_custom_call.1} parent=1 // pred_check
      _
    $region35: #{tpu_custom_call.1} parent=1 // pred_check_branch
      %34 = sbr.rel (0) target = $region37
    $region36: #{tpu_custom_call.1} parent=1 // pred_region
      _
    $region37: #{tpu_custom_call.1} parent=1 // pred_fallthru
      _
    %v35 = vld [vmem:[%s0] sm:$0xff]
    %v36 = vld [vmem:[%s1] sm:$0xff]
    %v37 = vld [vmem:[%s1 + $0x8] sm:$0xff]
    %v38 = vld [vmem:[%s1 + $0x10] sm:$0xff]
    %v39 = vld [vmem:[%s1 + $0x18] sm:$0xff]
    %v40 = vld [vmem:[%s1 + $0x20] sm:$0xff]
    %v41 = vld [vmem:[%s1 + $0x28] sm:$0xff]
    %v42 = vld [vmem:[%s1 + $0x30] sm:$0xff]
    %v43 = vld [vmem:[%s1 + $0x38] sm:$0xff]
    %v44 = vld [vmem:[%s2] sm:$0xff]
    %v45 = vld [vmem:[%s2 + $0x8] sm:$0xff]
    %v46 = vld [vmem:[%s2 + $0x10] sm:$0xff]
    %v47 = vld [vmem:[%s2 + $0x18] sm:$0xff]
    %v48 = vld [vmem:[%s2 + $0x20] sm:$0xff]
    %v49 = vld [vmem:[%s2 + $0x28] sm:$0xff]
    %v50 = vld [vmem:[%s2 + $0x30] sm:$0xff]
    %v51 = vld [vmem:[%s2 + $0x38] sm:$0xff]
    %53 = vset.pattern.permute.xlu0 0
    %54 = vperm.xlu0 %53, %v44
    %v55 = vpop.permute.xlu0 %54
    %58 = vset.pattern.permute.xlu0 0
    %59 = vperm.xlu0 %58, %v45
    %v60 = vpop.permute.xlu0 %59
    %63 = vset.pattern.permute.xlu0 0
    %64 = vperm.xlu0 %63, %v46
    %v65 = vpop.permute.xlu0 %64
    %68 = vset.pattern.permute.xlu0 0
    %69 = vperm.xlu0 %68, %v47
    %v70 = vpop.permute.xlu0 %69
    %73 = vset.pattern.permute.xlu0 0
    %74 = vperm.xlu0 %73, %v48
    %v75 = vpop.permute.xlu0 %74
    %78 = vset.pattern.permute.xlu0 0
    %79 = vperm.xlu0 %78, %v49
    %v80 = vpop.permute.xlu0 %79
    %83 = vset.pattern.permute.xlu0 0
    %84 = vperm.xlu0 %83, %v50
    %v85 = vpop.permute.xlu0 %84
    %88 = vset.pattern.permute.xlu0 0
    %89 = vperm.xlu0 %88, %v51
    %v90 = vpop.permute.xlu0 %89
    %vm92 = vcmask 64512
    %v94 = vsel %vm92, %v36, 0
    %v97 = vsel %vm92, %v37, 0
    %v100 = vsel %vm92, %v38, 0
    %v103 = vsel %vm92, %v39, 0
    %v106 = vsel %vm92, %v40, 0
    %v109 = vsel %vm92, %v41, 0
    %v112 = vsel %vm92, %v42, 0
    %v115 = vsel %vm92, %v43, 0
    %117 = vmatpush.msra.mxu0 0.0
    %118 = vmatpush.msra.mxu0 0.0
    %119 = vmatpush.msra.mxu0 0.0
    %120 = vmatpush.msra.mxu0 0.0
    %121 = vmatpush.msra.mxu0 0.0
    %122 = vmatpush.msra.mxu0 0.0
    %123 = vmatpush.msra.mxu0 0.0
    %124 = vmatpush.msra.mxu0 0.0
    %125 = vmatpush.msra.mxu0 0.0
    %126 = vmatpush.msra.mxu0 0.0
    %127 = vmatpush.msra.mxu0 0.0
    %128 = vmatpush.msra.mxu0 0.0
    %129 = vmatpush.msra.mxu0 0.0
    %130 = vmatpush.msra.mxu0 0.0
    %131 = vmatpush.msra.mxu0 0.0
    %132 = vmatpush.msra.mxu0 %v35
    %133 = vmatmul.f32.gmra.mxu0 %v94
    %v134 = vpop.f32.mrf.mxu0
    %v135 = vadd.f32 %v55, %v134
    %136 = vmatmul.f32.gmra.mxu0 %v97
    %v137 = vpop.f32.mrf.mxu0
    %v138 = vadd.f32 %v60, %v137
    %139 = vmatmul.f32.gmra.mxu0 %v100
    %v140 = vpop.f32.mrf.mxu0
    %v141 = vadd.f32 %v65, %v140
    %142 = vmatmul.f32.gmra.mxu0 %v103
    %v143 = vpop.f32.mrf.mxu0
    %v144 = vadd.f32 %v70, %v143
    %145 = vmatmul.f32.gmra.mxu0 %v106
    %v146 = vpop.f32.mrf.mxu0
    %v147 = vadd.f32 %v75, %v146
    %148 = vmatmul.f32.gmra.mxu0 %v109
    %v149 = vpop.f32.mrf.mxu0
    %v150 = vadd.f32 %v80, %v149
    %151 = vmatmul.f32.gmra.mxu0 %v112
    %v152 = vpop.f32.mrf.mxu0
    %v153 = vadd.f32 %v85, %v152
    %154 = vmatmul.f32.gmra.mxu0 %v115
    %v155 = vpop.f32.mrf.mxu0
    %v156 = vadd.f32 %v90, %v155
    %157 = vdwg.mxu0
    %v158 = vmax.f32 %v135, 0.0
    %v159 = vmax.f32 %v138, 0.0
    %v160 = vmax.f32 %v141, 0.0
    %v161 = vmax.f32 %v144, 0.0
    %v162 = vmax.f32 %v147, 0.0
    %v163 = vmax.f32 %v150, 0.0
    %v164 = vmax.f32 %v153, 0.0
    %v165 = vmax.f32 %v156, 0.0
    %v166 = vld [vmem:[%s3] sm:$0xff]
    %v167 = vld [vmem:[%s3 + $0x8] sm:$0xff]
    %v168 = vld [vmem:[%s3 + $0x10] sm:$0xff]
    %v169 = vld [vmem:[%s3 + $0x18] sm:$0xff]
    %v170 = vld [vmem:[%s3 + $0x20] sm:$0xff]
    %v171 = vld [vmem:[%s3 + $0x28] sm:$0xff]
    %v172 = vld [vmem:[%s3 + $0x30] sm:$0xff]
    %v173 = vld [vmem:[%s3 + $0x38] sm:$0xff]
    %v174 = vld [vmem:[%s3 + $0x40] sm:$0xff]
    %v175 = vld [vmem:[%s3 + $0x48] sm:$0xff]
    %v176 = vld [vmem:[%s3 + $0x50] sm:$0xff]
    %v177 = vld [vmem:[%s3 + $0x58] sm:$0xff]
    %v178 = vld [vmem:[%s3 + $0x60] sm:$0xff]
    %v179 = vld [vmem:[%s3 + $0x68] sm:$0xff]
    %v180 = vld [vmem:[%s3 + $0x70] sm:$0xff]
    %v181 = vld [vmem:[%s3 + $0x78] sm:$0xff]
    %v182 = vld [vmem:[%s3 + $0x80] sm:$0xff]
    %v183 = vld [vmem:[%s3 + $0x88] sm:$0xff]
    %v184 = vld [vmem:[%s3 + $0x90] sm:$0xff]
    %v185 = vld [vmem:[%s3 + $0x98] sm:$0xff]
    %v186 = vld [vmem:[%s3 + $0xa0] sm:$0xff]
    %v187 = vld [vmem:[%s3 + $0xa8] sm:$0xff]
    %v188 = vld [vmem:[%s3 + $0xb0] sm:$0xff]
    %v189 = vld [vmem:[%s3 + $0xb8] sm:$0xff]
    %v190 = vld [vmem:[%s3 + $0xc0] sm:$0xff]
    %v191 = vld [vmem:[%s3 + $0xc8] sm:$0xff]
    %v192 = vld [vmem:[%s3 + $0xd0] sm:$0xff]
    %v193 = vld [vmem:[%s3 + $0xd8] sm:$0xff]
    %v194 = vld [vmem:[%s3 + $0xe0] sm:$0xff]
    %v195 = vld [vmem:[%s3 + $0xe8] sm:$0xff]
    %v196 = vld [vmem:[%s3 + $0xf0] sm:$0xff]
    %v197 = vld [vmem:[%s3 + $0xf8] sm:$0xff]
    %v198 = vld [vmem:[%s4] sm:$0xff]
    %v199 = vld [vmem:[%s4 + $0x8] sm:$0xff]
    %v200 = vld [vmem:[%s4 + $0x10] sm:$0xff]
    %v201 = vld [vmem:[%s4 + $0x18] sm:$0xff]
    %v202 = vld [vmem:[%s4 + $0x20] sm:$0xff]
    %v203 = vld [vmem:[%s4 + $0x28] sm:$0xff]
    %v204 = vld [vmem:[%s4 + $0x30] sm:$0xff]
    %v205 = vld [vmem:[%s4 + $0x38] sm:$0xff]
    %v206 = vld [vmem:[%s4 + $0x40] sm:$0xff]
    %v207 = vld [vmem:[%s4 + $0x48] sm:$0xff]
    %v208 = vld [vmem:[%s4 + $0x50] sm:$0xff]
    %v209 = vld [vmem:[%s4 + $0x58] sm:$0xff]
    %v210 = vld [vmem:[%s4 + $0x60] sm:$0xff]
    %v211 = vld [vmem:[%s4 + $0x68] sm:$0xff]
    %v212 = vld [vmem:[%s4 + $0x70] sm:$0xff]
    %v213 = vld [vmem:[%s4 + $0x78] sm:$0xff]
    %v214 = vld [vmem:[%s4 + $0x80] sm:$0xff]
    %v215 = vld [vmem:[%s4 + $0x88] sm:$0xff]
    %v216 = vld [vmem:[%s4 + $0x90] sm:$0xff]
    %v217 = vld [vmem:[%s4 + $0x98] sm:$0xff]
    %v218 = vld [vmem:[%s4 + $0xa0] sm:$0xff]
    %v219 = vld [vmem:[%s4 + $0xa8] sm:$0xff]
    %v220 = vld [vmem:[%s4 + $0xb0] sm:$0xff]
    %v221 = vld [vmem:[%s4 + $0xb8] sm:$0xff]
    %v222 = vld [vmem:[%s4 + $0xc0] sm:$0xff]
    %v223 = vld [vmem:[%s4 + $0xc8] sm:$0xff]
    %v224 = vld [vmem:[%s4 + $0xd0] sm:$0xff]
    %v225 = vld [vmem:[%s4 + $0xd8] sm:$0xff]
    %v226 = vld [vmem:[%s4 + $0xe0] sm:$0xff]
    %v227 = vld [vmem:[%s4 + $0xe8] sm:$0xff]
    %v228 = vld [vmem:[%s4 + $0xf0] sm:$0xff]
    %v229 = vld [vmem:[%s4 + $0xf8] sm:$0xff]
    %231 = vset.pattern.permute.xlu0 0
    %232 = vperm.xlu0 %231, %v198
    %v233 = vpop.permute.xlu0 %232
    %236 = vset.pattern.permute.xlu0 0
    %237 = vperm.xlu0 %236, %v199
    %v238 = vpop.permute.xlu0 %237
    %241 = vset.pattern.permute.xlu0 0
    %242 = vperm.xlu0 %241, %v200
    %v243 = vpop.permute.xlu0 %242
    %246 = vset.pattern.permute.xlu0 0
    %247 = vperm.xlu0 %246, %v201
    %v248 = vpop.permute.xlu0 %247
    %251 = vset.pattern.permute.xlu0 0
    %252 = vperm.xlu0 %251, %v202
    %v253 = vpop.permute.xlu0 %252
    %256 = vset.pattern.permute.xlu0 0
    %257 = vperm.xlu0 %256, %v203
    %v258 = vpop.permute.xlu0 %257
    %261 = vset.pattern.permute.xlu0 0
    %262 = vperm.xlu0 %261, %v204
    %v263 = vpop.permute.xlu0 %262
    %266 = vset.pattern.permute.xlu0 0
    %267 = vperm.xlu0 %266, %v205
    %v268 = vpop.permute.xlu0 %267
    %271 = vset.pattern.permute.xlu0 0
    %272 = vperm.xlu0 %271, %v206
    %v273 = vpop.permute.xlu0 %272
    %276 = vset.pattern.permute.xlu0 0
    %277 = vperm.xlu0 %276, %v207
    %v278 = vpop.permute.xlu0 %277
    %281 = vset.pattern.permute.xlu0 0
    %282 = vperm.xlu0 %281, %v208
    %v283 = vpop.permute.xlu0 %282
    %286 = vset.pattern.permute.xlu0 0
    %287 = vperm.xlu0 %286, %v209
    %v288 = vpop.permute.xlu0 %287
    %291 = vset.pattern.permute.xlu0 0
    %292 = vperm.xlu0 %291, %v210
    %v293 = vpop.permute.xlu0 %292
    %296 = vset.pattern.permute.xlu0 0
    %297 = vperm.xlu0 %296, %v211
    %v298 = vpop.permute.xlu0 %297
    %301 = vset.pattern.permute.xlu0 0
    %302 = vperm.xlu0 %301, %v212
    %v303 = vpop.permute.xlu0 %302
    %306 = vset.pattern.permute.xlu0 0
    %307 = vperm.xlu0 %306, %v213
    %v308 = vpop.permute.xlu0 %307
    %311 = vset.pattern.permute.xlu0 0
    %312 = vperm.xlu0 %311, %v214
    %v313 = vpop.permute.xlu0 %312
    %316 = vset.pattern.permute.xlu0 0
    %317 = vperm.xlu0 %316, %v215
    %v318 = vpop.permute.xlu0 %317
    %321 = vset.pattern.permute.xlu0 0
    %322 = vperm.xlu0 %321, %v216
    %v323 = vpop.permute.xlu0 %322
    %326 = vset.pattern.permute.xlu0 0
    %327 = vperm.xlu0 %326, %v217
    %v328 = vpop.permute.xlu0 %327
    %331 = vset.pattern.permute.xlu0 0
    %332 = vperm.xlu0 %331, %v218
    %v333 = vpop.permute.xlu0 %332
    %336 = vset.pattern.permute.xlu0 0
    %337 = vperm.xlu0 %336, %v219
    %v338 = vpop.permute.xlu0 %337
    %341 = vset.pattern.permute.xlu0 0
    %342 = vperm.xlu0 %341, %v220
    %v343 = vpop.permute.xlu0 %342
    %346 = vset.pattern.permute.xlu0 0
    %347 = vperm.xlu0 %346, %v221
    %v348 = vpop.permute.xlu0 %347
    %351 = vset.pattern.permute.xlu0 0
    %352 = vperm.xlu0 %351, %v222
    %v353 = vpop.permute.xlu0 %352
    %356 = vset.pattern.permute.xlu0 0
    %357 = vperm.xlu0 %356, %v223
    %v358 = vpop.permute.xlu0 %357
    %361 = vset.pattern.permute.xlu0 0
    %362 = vperm.xlu0 %361, %v224
    %v363 = vpop.permute.xlu0 %362
    %366 = vset.pattern.permute.xlu0 0
    %367 = vperm.xlu0 %366, %v225
    %v368 = vpop.permute.xlu0 %367
    %371 = vset.pattern.permute.xlu0 0
    %372 = vperm.xlu0 %371, %v226
    %v373 = vpop.permute.xlu0 %372
    %376 = vset.pattern.permute.xlu0 0
    %377 = vperm.xlu0 %376, %v227
    %v378 = vpop.permute.xlu0 %377
    %381 = vset.pattern.permute.xlu0 0
    %382 = vperm.xlu0 %381, %v228
    %v383 = vpop.permute.xlu0 %382
    %386 = vset.pattern.permute.xlu0 0
    %387 = vperm.xlu0 %386, %v229
    %v388 = vpop.permute.xlu0 %387
    %vm390 = vcmask 523264
    %v392 = vsel %vm390, %v166, 0
    %v395 = vsel %vm390, %v167, 0
    %v398 = vsel %vm390, %v168, 0
    %v401 = vsel %vm390, %v169, 0
    %v404 = vsel %vm390, %v170, 0
    %v407 = vsel %vm390, %v171, 0
    %v410 = vsel %vm390, %v172, 0
    %v413 = vsel %vm390, %v173, 0
    %v416 = vsel %vm390, %v174, 0
    %v419 = vsel %vm390, %v175, 0
    %v422 = vsel %vm390, %v176, 0
    %v425 = vsel %vm390, %v177, 0
    %v428 = vsel %vm390, %v178, 0
    %v431 = vsel %vm390, %v179, 0
    %v434 = vsel %vm390, %v180, 0
    %v437 = vsel %vm390, %v181, 0
    %v440 = vsel %vm390, %v182, 0
    %v443 = vsel %vm390, %v183, 0
    %v446 = vsel %vm390, %v184, 0
    %v449 = vsel %vm390, %v185, 0
    %v452 = vsel %vm390, %v186, 0
    %v455 = vsel %vm390, %v187, 0
    %v458 = vsel %vm390, %v188, 0
    %v461 = vsel %vm390, %v189, 0
    %v464 = vsel %vm390, %v190, 0
    %v467 = vsel %vm390, %v191, 0
    %v470 = vsel %vm390, %v192, 0
    %v473 = vsel %vm390, %v193, 0
    %v476 = vsel %vm390, %v194, 0
    %v479 = vsel %vm390, %v195, 0
    %v482 = vsel %vm390, %v196, 0
    %v485 = vsel %vm390, %v197, 0
    %487 = vmatpush.msra.mxu0 0.0
    %488 = vmatpush.msra.mxu0 0.0
    %489 = vmatpush.msra.mxu0 0.0
    %490 = vmatpush.msra.mxu0 0.0
    %491 = vmatpush.msra.mxu0 0.0
    %492 = vmatpush.msra.mxu0 0.0
    %493 = vmatpush.msra.mxu0 0.0
    %494 = vmatpush.msra.mxu0 0.0
    %495 = vmatpush.msra.mxu0 %v165
    %496 = vmatpush.msra.mxu0 %v164
    %497 = vmatpush.msra.mxu0 %v163
    %498 = vmatpush.msra.mxu0 %v162
    %499 = vmatpush.msra.mxu0 %v161
    %500 = vmatpush.msra.mxu0 %v160
    %501 = vmatpush.msra.mxu0 %v159
    %502 = vmatpush.msra.mxu0 %v158
    %503 = vmatmul.f32.gmra.mxu0 %v392
    %v504 = vpop.f32.mrf.mxu0
    %v505 = vadd.f32 %v233, %v504
    %506 = vmatmul.f32.gmra.mxu0 %v395
    %v507 = vpop.f32.mrf.mxu0
    %v508 = vadd.f32 %v238, %v507
    %509 = vmatmul.f32.gmra.mxu0 %v398
    %v510 = vpop.f32.mrf.mxu0
    %v511 = vadd.f32 %v243, %v510
    %512 = vmatmul.f32.gmra.mxu0 %v401
    %v513 = vpop.f32.mrf.mxu0
    %v514 = vadd.f32 %v248, %v513
    %515 = vmatmul.f32.gmra.mxu0 %v404
    %v516 = vpop.f32.mrf.mxu0
    %v517 = vadd.f32 %v253, %v516
    %518 = vmatmul.f32.gmra.mxu0 %v407
    %v519 = vpop.f32.mrf.mxu0
    %v520 = vadd.f32 %v258, %v519
    %521 = vmatmul.f32.gmra.mxu0 %v410
    %v522 = vpop.f32.mrf.mxu0
    %v523 = vadd.f32 %v263, %v522
    %524 = vmatmul.f32.gmra.mxu0 %v413
    %v525 = vpop.f32.mrf.mxu0
    %v526 = vadd.f32 %v268, %v525
    %527 = vmatmul.f32.gmra.mxu0 %v416
    %v528 = vpop.f32.mrf.mxu0
    %v529 = vadd.f32 %v273, %v528
    %530 = vmatmul.f32.gmra.mxu0 %v419
    %v531 = vpop.f32.mrf.mxu0
    %v532 = vadd.f32 %v278, %v531
    %533 = vmatmul.f32.gmra.mxu0 %v422
    %v534 = vpop.f32.mrf.mxu0
    %v535 = vadd.f32 %v283, %v534
    %536 = vmatmul.f32.gmra.mxu0 %v425
    %v537 = vpop.f32.mrf.mxu0
    %v538 = vadd.f32 %v288, %v537
    %539 = vmatmul.f32.gmra.mxu0 %v428
    %v540 = vpop.f32.mrf.mxu0
    %v541 = vadd.f32 %v293, %v540
    %542 = vmatmul.f32.gmra.mxu0 %v431
    %v543 = vpop.f32.mrf.mxu0
    %v544 = vadd.f32 %v298, %v543
    %545 = vmatmul.f32.gmra.mxu0 %v434
    %v546 = vpop.f32.mrf.mxu0
    %v547 = vadd.f32 %v303, %v546
    %548 = vmatmul.f32.gmra.mxu0 %v437
    %v549 = vpop.f32.mrf.mxu0
    %v550 = vadd.f32 %v308, %v549
    %551 = vmatmul.f32.gmra.mxu0 %v440
    %v552 = vpop.f32.mrf.mxu0
    %v553 = vadd.f32 %v313, %v552
    %554 = vmatmul.f32.gmra.mxu0 %v443
    %v555 = vpop.f32.mrf.mxu0
    %v556 = vadd.f32 %v318, %v555
    %557 = vmatmul.f32.gmra.mxu0 %v446
    %v558 = vpop.f32.mrf.mxu0
    %v559 = vadd.f32 %v323, %v558
    %560 = vmatmul.f32.gmra.mxu0 %v449
    %v561 = vpop.f32.mrf.mxu0
    %v562 = vadd.f32 %v328, %v561
    %563 = vmatmul.f32.gmra.mxu0 %v452
    %v564 = vpop.f32.mrf.mxu0
    %v565 = vadd.f32 %v333, %v564
    %566 = vmatmul.f32.gmra.mxu0 %v455
    %v567 = vpop.f32.mrf.mxu0
    %v568 = vadd.f32 %v338, %v567
    %569 = vmatmul.f32.gmra.mxu0 %v458
    %v570 = vpop.f32.mrf.mxu0
    %v571 = vadd.f32 %v343, %v570
    %572 = vmatmul.f32.gmra.mxu0 %v461
    %v573 = vpop.f32.mrf.mxu0
    %v574 = vadd.f32 %v348, %v573
    %575 = vmatmul.f32.gmra.mxu0 %v464
    %v576 = vpop.f32.mrf.mxu0
    %v577 = vadd.f32 %v353, %v576
    %578 = vmatmul.f32.gmra.mxu0 %v467
    %v579 = vpop.f32.mrf.mxu0
    %v580 = vadd.f32 %v358, %v579
    %581 = vmatmul.f32.gmra.mxu0 %v470
    %v582 = vpop.f32.mrf.mxu0
    %v583 = vadd.f32 %v363, %v582
    %584 = vmatmul.f32.gmra.mxu0 %v473
    %v585 = vpop.f32.mrf.mxu0
    %v586 = vadd.f32 %v368, %v585
    %587 = vmatmul.f32.gmra.mxu0 %v476
    %v588 = vpop.f32.mrf.mxu0
    %v589 = vadd.f32 %v373, %v588
    %590 = vmatmul.f32.gmra.mxu0 %v479
    %v591 = vpop.f32.mrf.mxu0
    %v592 = vadd.f32 %v378, %v591
    %593 = vmatmul.f32.gmra.mxu0 %v482
    %v594 = vpop.f32.mrf.mxu0
    %v595 = vadd.f32 %v383, %v594
    %596 = vmatmul.f32.gmra.mxu0 %v485
    %v597 = vpop.f32.mrf.mxu0
    %v598 = vadd.f32 %v388, %v597
    %599 = vdwg.mxu0
    %v600 = vmax.f32 %v505, 0.0
    %v601 = vmax.f32 %v508, 0.0
    %v602 = vmax.f32 %v511, 0.0
    %v603 = vmax.f32 %v514, 0.0
    %v604 = vmax.f32 %v517, 0.0
    %v605 = vmax.f32 %v520, 0.0
    %v606 = vmax.f32 %v523, 0.0
    %v607 = vmax.f32 %v526, 0.0
    %v608 = vmax.f32 %v529, 0.0
    %v609 = vmax.f32 %v532, 0.0
    %v610 = vmax.f32 %v535, 0.0
    %v611 = vmax.f32 %v538, 0.0
    %v612 = vmax.f32 %v541, 0.0
    %v613 = vmax.f32 %v544, 0.0
    %v614 = vmax.f32 %v547, 0.0
    %v615 = vmax.f32 %v550, 0.0
    %v616 = vmax.f32 %v553, 0.0
    %v617 = vmax.f32 %v556, 0.0
    %v618 = vmax.f32 %v559, 0.0
    %v619 = vmax.f32 %v562, 0.0
    %v620 = vmax.f32 %v565, 0.0
    %v621 = vmax.f32 %v568, 0.0
    %v622 = vmax.f32 %v571, 0.0
    %v623 = vmax.f32 %v574, 0.0
    %v624 = vmax.f32 %v577, 0.0
    %v625 = vmax.f32 %v580, 0.0
    %v626 = vmax.f32 %v583, 0.0
    %v627 = vmax.f32 %v586, 0.0
    %v628 = vmax.f32 %v589, 0.0
    %v629 = vmax.f32 %v592, 0.0
    %v630 = vmax.f32 %v595, 0.0
    %v631 = vmax.f32 %v598, 0.0
    %v632 = vld [vmem:[%s5] sm:$0xff]
    %v633 = vld [vmem:[%s5 + $0x8] sm:$0xff]
    %v634 = vld [vmem:[%s5 + $0x10] sm:$0xff]
    %v635 = vld [vmem:[%s5 + $0x18] sm:$0xff]
    %v636 = vld [vmem:[%s5 + $0x20] sm:$0xff]
    %v637 = vld [vmem:[%s5 + $0x28] sm:$0xff]
    %v638 = vld [vmem:[%s5 + $0x30] sm:$0xff]
    %v639 = vld [vmem:[%s5 + $0x38] sm:$0xff]
    %v640 = vld [vmem:[%s5 + $0x40] sm:$0xff]
    %v641 = vld [vmem:[%s5 + $0x48] sm:$0xff]
    %v642 = vld [vmem:[%s5 + $0x50] sm:$0xff]
    %v643 = vld [vmem:[%s5 + $0x58] sm:$0xff]
    %v644 = vld [vmem:[%s5 + $0x60] sm:$0xff]
    %v645 = vld [vmem:[%s5 + $0x68] sm:$0xff]
    %v646 = vld [vmem:[%s5 + $0x70] sm:$0xff]
    %v647 = vld [vmem:[%s5 + $0x78] sm:$0xff]
    %v648 = vld [vmem:[%s5 + $0x80] sm:$0xff]
    %v649 = vld [vmem:[%s5 + $0x88] sm:$0xff]
    %v650 = vld [vmem:[%s5 + $0x90] sm:$0xff]
    %v651 = vld [vmem:[%s5 + $0x98] sm:$0xff]
    %v652 = vld [vmem:[%s5 + $0xa0] sm:$0xff]
    %v653 = vld [vmem:[%s5 + $0xa8] sm:$0xff]
    %v654 = vld [vmem:[%s5 + $0xb0] sm:$0xff]
    %v655 = vld [vmem:[%s5 + $0xb8] sm:$0xff]
    %v656 = vld [vmem:[%s5 + $0xc0] sm:$0xff]
    %v657 = vld [vmem:[%s5 + $0xc8] sm:$0xff]
    %v658 = vld [vmem:[%s5 + $0xd0] sm:$0xff]
    %v659 = vld [vmem:[%s5 + $0xd8] sm:$0xff]
    %v660 = vld [vmem:[%s5 + $0xe0] sm:$0xff]
    %v661 = vld [vmem:[%s5 + $0xe8] sm:$0xff]
    %v662 = vld [vmem:[%s5 + $0xf0] sm:$0xff]
    %v663 = vld [vmem:[%s5 + $0xf8] sm:$0xff]
    %v664 = vld [vmem:[%s5 + $0x100] sm:$0xff]
    %v665 = vld [vmem:[%s5 + $0x108] sm:$0xff]
    %v666 = vld [vmem:[%s5 + $0x110] sm:$0xff]
    %v667 = vld [vmem:[%s5 + $0x118] sm:$0xff]
    %v668 = vld [vmem:[%s5 + $0x120] sm:$0xff]
    %v669 = vld [vmem:[%s5 + $0x128] sm:$0xff]
    %v670 = vld [vmem:[%s5 + $0x130] sm:$0xff]
    %v671 = vld [vmem:[%s5 + $0x138] sm:$0xff]
    %v672 = vld [vmem:[%s5 + $0x140] sm:$0xff]
    %v673 = vld [vmem:[%s5 + $0x148] sm:$0xff]
    %v674 = vld [vmem:[%s5 + $0x150] sm:$0xff]
    %v675 = vld [vmem:[%s5 + $0x158] sm:$0xff]
    %v676 = vld [vmem:[%s5 + $0x160] sm:$0xff]
    %v677 = vld [vmem:[%s5 + $0x168] sm:$0xff]
    %v678 = vld [vmem:[%s5 + $0x170] sm:$0xff]
    %v679 = vld [vmem:[%s5 + $0x178] sm:$0xff]
    %v680 = vld [vmem:[%s5 + $0x180] sm:$0xff]
    %v681 = vld [vmem:[%s5 + $0x188] sm:$0xff]
    %v682 = vld [vmem:[%s5 + $0x190] sm:$0xff]
    %v683 = vld [vmem:[%s5 + $0x198] sm:$0xff]
    %v684 = vld [vmem:[%s5 + $0x1a0] sm:$0xff]
    %v685 = vld [vmem:[%s5 + $0x1a8] sm:$0xff]
    %v686 = vld [vmem:[%s5 + $0x1b0] sm:$0xff]
    %v687 = vld [vmem:[%s5 + $0x1b8] sm:$0xff]
    %v688 = vld [vmem:[%s5 + $0x1c0] sm:$0xff]
    %v689 = vld [vmem:[%s5 + $0x1c8] sm:$0xff]
    %v690 = vld [vmem:[%s5 + $0x1d0] sm:$0xff]
    %v691 = vld [vmem:[%s5 + $0x1d8] sm:$0xff]
    %v692 = vld [vmem:[%s5 + $0x1e0] sm:$0xff]
    %v693 = vld [vmem:[%s5 + $0x1e8] sm:$0xff]
    %v694 = vld [vmem:[%s5 + $0x1f0] sm:$0xff]
    %v695 = vld [vmem:[%s5 + $0x1f8] sm:$0xff]
    %v696 = vld [vmem:[%s6] sm:$0xff]
    %v697 = vld [vmem:[%s6 + $0x8] sm:$0xff]
    %v698 = vld [vmem:[%s6 + $0x10] sm:$0xff]
    %v699 = vld [vmem:[%s6 + $0x18] sm:$0xff]
    %v700 = vld [vmem:[%s6 + $0x20] sm:$0xff]
    %v701 = vld [vmem:[%s6 + $0x28] sm:$0xff]
    %v702 = vld [vmem:[%s6 + $0x30] sm:$0xff]
    %v703 = vld [vmem:[%s6 + $0x38] sm:$0xff]
    %v704 = vld [vmem:[%s6 + $0x40] sm:$0xff]
    %v705 = vld [vmem:[%s6 + $0x48] sm:$0xff]
    %v706 = vld [vmem:[%s6 + $0x50] sm:$0xff]
    %v707 = vld [vmem:[%s6 + $0x58] sm:$0xff]
    %v708 = vld [vmem:[%s6 + $0x60] sm:$0xff]
    %v709 = vld [vmem:[%s6 + $0x68] sm:$0xff]
    %v710 = vld [vmem:[%s6 + $0x70] sm:$0xff]
    %v711 = vld [vmem:[%s6 + $0x78] sm:$0xff]
    %v712 = vld [vmem:[%s6 + $0x80] sm:$0xff]
    %v713 = vld [vmem:[%s6 + $0x88] sm:$0xff]
    %v714 = vld [vmem:[%s6 + $0x90] sm:$0xff]
    %v715 = vld [vmem:[%s6 + $0x98] sm:$0xff]
    %v716 = vld [vmem:[%s6 + $0xa0] sm:$0xff]
    %v717 = vld [vmem:[%s6 + $0xa8] sm:$0xff]
    %v718 = vld [vmem:[%s6 + $0xb0] sm:$0xff]
    %v719 = vld [vmem:[%s6 + $0xb8] sm:$0xff]
    %v720 = vld [vmem:[%s6 + $0xc0] sm:$0xff]
    %v721 = vld [vmem:[%s6 + $0xc8] sm:$0xff]
    %v722 = vld [vmem:[%s6 + $0xd0] sm:$0xff]
    %v723 = vld [vmem:[%s6 + $0xd8] sm:$0xff]
    %v724 = vld [vmem:[%s6 + $0xe0] sm:$0xff]
    %v725 = vld [vmem:[%s6 + $0xe8] sm:$0xff]
    %v726 = vld [vmem:[%s6 + $0xf0] sm:$0xff]
    %v727 = vld [vmem:[%s6 + $0xf8] sm:$0xff]
    %729 = vset.pattern.permute.xlu0 0
    %730 = vperm.xlu0 %729, %v696
    %v731 = vpop.permute.xlu0 %730
    %734 = vset.pattern.permute.xlu0 0
    %735 = vperm.xlu0 %734, %v697
    %v736 = vpop.permute.xlu0 %735
    %739 = vset.pattern.permute.xlu0 0
    %740 = vperm.xlu0 %739, %v698
    %v741 = vpop.permute.xlu0 %740
    %744 = vset.pattern.permute.xlu0 0
    %745 = vperm.xlu0 %744, %v699
    %v746 = vpop.permute.xlu0 %745
    %749 = vset.pattern.permute.xlu0 0
    %750 = vperm.xlu0 %749, %v700
    %v751 = vpop.permute.xlu0 %750
    %754 = vset.pattern.permute.xlu0 0
    %755 = vperm.xlu0 %754, %v701
    %v756 = vpop.permute.xlu0 %755
    %759 = vset.pattern.permute.xlu0 0
    %760 = vperm.xlu0 %759, %v702
    %v761 = vpop.permute.xlu0 %760
    %764 = vset.pattern.permute.xlu0 0
    %765 = vperm.xlu0 %764, %v703
    %v766 = vpop.permute.xlu0 %765
    %769 = vset.pattern.permute.xlu0 0
    %770 = vperm.xlu0 %769, %v704
    %v771 = vpop.permute.xlu0 %770
    %774 = vset.pattern.permute.xlu0 0
    %775 = vperm.xlu0 %774, %v705
    %v776 = vpop.permute.xlu0 %775
    %779 = vset.pattern.permute.xlu0 0
    %780 = vperm.xlu0 %779, %v706
    %v781 = vpop.permute.xlu0 %780
    %784 = vset.pattern.permute.xlu0 0
    %785 = vperm.xlu0 %784, %v707
    %v786 = vpop.permute.xlu0 %785
    %789 = vset.pattern.permute.xlu0 0
    %790 = vperm.xlu0 %789, %v708
    %v791 = vpop.permute.xlu0 %790
    %794 = vset.pattern.permute.xlu0 0
    %795 = vperm.xlu0 %794, %v709
    %v796 = vpop.permute.xlu0 %795
    %799 = vset.pattern.permute.xlu0 0
    %800 = vperm.xlu0 %799, %v710
    %v801 = vpop.permute.xlu0 %800
    %804 = vset.pattern.permute.xlu0 0
    %805 = vperm.xlu0 %804, %v711
    %v806 = vpop.permute.xlu0 %805
    %809 = vset.pattern.permute.xlu0 0
    %810 = vperm.xlu0 %809, %v712
    %v811 = vpop.permute.xlu0 %810
    %814 = vset.pattern.permute.xlu0 0
    %815 = vperm.xlu0 %814, %v713
    %v816 = vpop.permute.xlu0 %815
    %819 = vset.pattern.permute.xlu0 0
    %820 = vperm.xlu0 %819, %v714
    %v821 = vpop.permute.xlu0 %820
    %824 = vset.pattern.permute.xlu0 0
    %825 = vperm.xlu0 %824, %v715
    %v826 = vpop.permute.xlu0 %825
    %829 = vset.pattern.permute.xlu0 0
    %830 = vperm.xlu0 %829, %v716
    %v831 = vpop.permute.xlu0 %830
    %834 = vset.pattern.permute.xlu0 0
    %835 = vperm.xlu0 %834, %v717
    %v836 = vpop.permute.xlu0 %835
    %839 = vset.pattern.permute.xlu0 0
    %840 = vperm.xlu0 %839, %v718
    %v841 = vpop.permute.xlu0 %840
    %844 = vset.pattern.permute.xlu0 0
    %845 = vperm.xlu0 %844, %v719
    %v846 = vpop.permute.xlu0 %845
    %849 = vset.pattern.permute.xlu0 0
    %850 = vperm.xlu0 %849, %v720
    %v851 = vpop.permute.xlu0 %850
    %854 = vset.pattern.permute.xlu0 0
    %855 = vperm.xlu0 %854, %v721
    %v856 = vpop.permute.xlu0 %855
    %859 = vset.pattern.permute.xlu0 0
    %860 = vperm.xlu0 %859, %v722
    %v861 = vpop.permute.xlu0 %860
    %864 = vset.pattern.permute.xlu0 0
    %865 = vperm.xlu0 %864, %v723
    %v866 = vpop.permute.xlu0 %865
    %869 = vset.pattern.permute.xlu0 0
    %870 = vperm.xlu0 %869, %v724
    %v871 = vpop.permute.xlu0 %870
    %874 = vset.pattern.permute.xlu0 0
    %875 = vperm.xlu0 %874, %v725
    %v876 = vpop.permute.xlu0 %875
    %879 = vset.pattern.permute.xlu0 0
    %880 = vperm.xlu0 %879, %v726
    %v881 = vpop.permute.xlu0 %880
    %884 = vset.pattern.permute.xlu0 0
    %885 = vperm.xlu0 %884, %v727
    %v886 = vpop.permute.xlu0 %885
    %888 = vmatpush.msra.mxu0 %v615
    %889 = vmatpush.msra.mxu0 %v614
    %890 = vmatpush.msra.mxu0 %v613
    %891 = vmatpush.msra.mxu0 %v612
    %892 = vmatpush.msra.mxu0 %v611
    %893 = vmatpush.msra.mxu0 %v610
    %894 = vmatpush.msra.mxu0 %v609
    %895 = vmatpush.msra.mxu0 %v608
    %896 = vmatpush.msra.mxu0 %v607
    %897 = vmatpush.msra.mxu0 %v606
    %898 = vmatpush.msra.mxu0 %v605
    %899 = vmatpush.msra.mxu0 %v604
    %900 = vmatpush.msra.mxu0 %v603
    %901 = vmatpush.msra.mxu0 %v602
    %902 = vmatpush.msra.mxu0 %v601
    %903 = vmatpush.msra.mxu0 %v600
    %904 = vmatmul.f32.gmra.mxu0 %v632
    %v905 = vpop.f32.mrf.mxu0
    %v906 = vadd.f32 %v731, %v905
    %907 = vmatmul.f32.gmra.mxu0 %v634
    %v908 = vpop.f32.mrf.mxu0
    %v909 = vadd.f32 %v736, %v908
    %910 = vmatmul.f32.gmra.mxu0 %v636
    %v911 = vpop.f32.mrf.mxu0
    %v912 = vadd.f32 %v741, %v911
    %913 = vmatmul.f32.gmra.mxu0 %v638
    %v914 = vpop.f32.mrf.mxu0
    %v915 = vadd.f32 %v746, %v914
    %916 = vmatmul.f32.gmra.mxu0 %v640
    %v917 = vpop.f32.mrf.mxu0
    %v918 = vadd.f32 %v751, %v917
    %919 = vmatmul.f32.gmra.mxu0 %v642
    %v920 = vpop.f32.mrf.mxu0
    %v921 = vadd.f32 %v756, %v920
    %922 = vmatmul.f32.gmra.mxu0 %v644
    %v923 = vpop.f32.mrf.mxu0
    %v924 = vadd.f32 %v761, %v923
    %925 = vmatmul.f32.gmra.mxu0 %v646
    %v926 = vpop.f32.mrf.mxu0
    %v927 = vadd.f32 %v766, %v926
    %928 = vmatmul.f32.gmra.mxu0 %v648
    %v929 = vpop.f32.mrf.mxu0
    %v930 = vadd.f32 %v771, %v929
    %931 = vmatmul.f32.gmra.mxu0 %v650
    %v932 = vpop.f32.mrf.mxu0
    %v933 = vadd.f32 %v776, %v932
    %934 = vmatmul.f32.gmra.mxu0 %v652
    %v935 = vpop.f32.mrf.mxu0
    %v936 = vadd.f32 %v781, %v935
    %937 = vmatmul.f32.gmra.mxu0 %v654
    %v938 = vpop.f32.mrf.mxu0
    %v939 = vadd.f32 %v786, %v938
    %940 = vmatmul.f32.gmra.mxu0 %v656
    %v941 = vpop.f32.mrf.mxu0
    %v942 = vadd.f32 %v791, %v941
    %943 = vmatmul.f32.gmra.mxu0 %v658
    %v944 = vpop.f32.mrf.mxu0
    %v945 = vadd.f32 %v796, %v944
    %946 = vmatmul.f32.gmra.mxu0 %v660
    %v947 = vpop.f32.mrf.mxu0
    %v948 = vadd.f32 %v801, %v947
    %949 = vmatmul.f32.gmra.mxu0 %v662
    %v950 = vpop.f32.mrf.mxu0
    %v951 = vadd.f32 %v806, %v950
    %952 = vmatmul.f32.gmra.mxu0 %v664
    %v953 = vpop.f32.mrf.mxu0
    %v954 = vadd.f32 %v811, %v953
    %955 = vmatmul.f32.gmra.mxu0 %v666
    %v956 = vpop.f32.mrf.mxu0
    %v957 = vadd.f32 %v816, %v956
    %958 = vmatmul.f32.gmra.mxu0 %v668
    %v959 = vpop.f32.mrf.mxu0
    %v960 = vadd.f32 %v821, %v959
    %961 = vmatmul.f32.gmra.mxu0 %v670
    %v962 = vpop.f32.mrf.mxu0
    %v963 = vadd.f32 %v826, %v962
    %964 = vmatmul.f32.gmra.mxu0 %v672
    %v965 = vpop.f32.mrf.mxu0
    %v966 = vadd.f32 %v831, %v965
    %967 = vmatmul.f32.gmra.mxu0 %v674
    %v968 = vpop.f32.mrf.mxu0
    %v969 = vadd.f32 %v836, %v968
    %970 = vmatmul.f32.gmra.mxu0 %v676
    %v971 = vpop.f32.mrf.mxu0
    %v972 = vadd.f32 %v841, %v971
    %973 = vmatmul.f32.gmra.mxu0 %v678
    %v974 = vpop.f32.mrf.mxu0
    %v975 = vadd.f32 %v846, %v974
    %976 = vmatmul.f32.gmra.mxu0 %v680
    %v977 = vpop.f32.mrf.mxu0
    %v978 = vadd.f32 %v851, %v977
    %979 = vmatmul.f32.gmra.mxu0 %v682
    %v980 = vpop.f32.mrf.mxu0
    %v981 = vadd.f32 %v856, %v980
    %982 = vmatmul.f32.gmra.mxu0 %v684
    %v983 = vpop.f32.mrf.mxu0
    %v984 = vadd.f32 %v861, %v983
    %985 = vmatmul.f32.gmra.mxu0 %v686
    %v986 = vpop.f32.mrf.mxu0
    %v987 = vadd.f32 %v866, %v986
    %988 = vmatmul.f32.gmra.mxu0 %v688
    %v989 = vpop.f32.mrf.mxu0
    %v990 = vadd.f32 %v871, %v989
    %991 = vmatmul.f32.gmra.mxu0 %v690
    %v992 = vpop.f32.mrf.mxu0
    %v993 = vadd.f32 %v876, %v992
    %994 = vmatmul.f32.gmra.mxu0 %v692
    %v995 = vpop.f32.mrf.mxu0
    %v996 = vadd.f32 %v881, %v995
    %997 = vmatmul.f32.gmra.mxu0 %v694
    %v998 = vpop.f32.mrf.mxu0
    %v999 = vadd.f32 %v886, %v998
    %1000 = vdwg.mxu0
    %1001 = vmatpush.msra.mxu0 %v631
    %1002 = vmatpush.msra.mxu0 %v630
    %1003 = vmatpush.msra.mxu0 %v629
    %1004 = vmatpush.msra.mxu0 %v628
    %1005 = vmatpush.msra.mxu0 %v627
    %1006 = vmatpush.msra.mxu0 %v626
    %1007 = vmatpush.msra.mxu0 %v625
    %1008 = vmatpush.msra.mxu0 %v624
    %1009 = vmatpush.msra.mxu0 %v623
    %1010 = vmatpush.msra.mxu0 %v622
    %1011 = vmatpush.msra.mxu0 %v621
    %1012 = vmatpush.msra.mxu0 %v620
    %1013 = vmatpush.msra.mxu0 %v619
    %1014 = vmatpush.msra.mxu0 %v618
    %1015 = vmatpush.msra.mxu0 %v617
    %1016 = vmatpush.msra.mxu0 %v616
    %1017 = vmatmul.f32.gmra.mxu0 %v633
    %v1018 = vpop.f32.mrf.mxu0
    %v1019 = vadd.f32 %v906, %v1018
    %1020 = vmatmul.f32.gmra.mxu0 %v635
    %v1021 = vpop.f32.mrf.mxu0
    %v1022 = vadd.f32 %v909, %v1021
    %1023 = vmatmul.f32.gmra.mxu0 %v637
    %v1024 = vpop.f32.mrf.mxu0
    %v1025 = vadd.f32 %v912, %v1024
    %1026 = vmatmul.f32.gmra.mxu0 %v639
    %v1027 = vpop.f32.mrf.mxu0
    %v1028 = vadd.f32 %v915, %v1027
    %1029 = vmatmul.f32.gmra.mxu0 %v641
    %v1030 = vpop.f32.mrf.mxu0
    %v1031 = vadd.f32 %v918, %v1030
    %1032 = vmatmul.f32.gmra.mxu0 %v643
    %v1033 = vpop.f32.mrf.mxu0
    %v1034 = vadd.f32 %v921, %v1033
    %1035 = vmatmul.f32.gmra.mxu0 %v645
    %v1036 = vpop.f32.mrf.mxu0
    %v1037 = vadd.f32 %v924, %v1036
    %1038 = vmatmul.f32.gmra.mxu0 %v647
    %v1039 = vpop.f32.mrf.mxu0
    %v1040 = vadd.f32 %v927, %v1039
    %1041 = vmatmul.f32.gmra.mxu0 %v649
    %v1042 = vpop.f32.mrf.mxu0
    %v1043 = vadd.f32 %v930, %v1042
    %1044 = vmatmul.f32.gmra.mxu0 %v651
    %v1045 = vpop.f32.mrf.mxu0
    %v1046 = vadd.f32 %v933, %v1045
    %1047 = vmatmul.f32.gmra.mxu0 %v653
    %v1048 = vpop.f32.mrf.mxu0
    %v1049 = vadd.f32 %v936, %v1048
    %1050 = vmatmul.f32.gmra.mxu0 %v655
    %v1051 = vpop.f32.mrf.mxu0
    %v1052 = vadd.f32 %v939, %v1051
    %1053 = vmatmul.f32.gmra.mxu0 %v657
    %v1054 = vpop.f32.mrf.mxu0
    %v1055 = vadd.f32 %v942, %v1054
    %1056 = vmatmul.f32.gmra.mxu0 %v659
    %v1057 = vpop.f32.mrf.mxu0
    %v1058 = vadd.f32 %v945, %v1057
    %1059 = vmatmul.f32.gmra.mxu0 %v661
    %v1060 = vpop.f32.mrf.mxu0
    %v1061 = vadd.f32 %v948, %v1060
    %1062 = vmatmul.f32.gmra.mxu0 %v663
    %v1063 = vpop.f32.mrf.mxu0
    %v1064 = vadd.f32 %v951, %v1063
    %1065 = vmatmul.f32.gmra.mxu0 %v665
    %v1066 = vpop.f32.mrf.mxu0
    %v1067 = vadd.f32 %v954, %v1066
    %1068 = vmatmul.f32.gmra.mxu0 %v667
    %v1069 = vpop.f32.mrf.mxu0
    %v1070 = vadd.f32 %v957, %v1069
    %1071 = vmatmul.f32.gmra.mxu0 %v669
    %v1072 = vpop.f32.mrf.mxu0
    %v1073 = vadd.f32 %v960, %v1072
    %1074 = vmatmul.f32.gmra.mxu0 %v671
    %v1075 = vpop.f32.mrf.mxu0
    %v1076 = vadd.f32 %v963, %v1075
    %1077 = vmatmul.f32.gmra.mxu0 %v673
    %v1078 = vpop.f32.mrf.mxu0
    %v1079 = vadd.f32 %v966, %v1078
    %1080 = vmatmul.f32.gmra.mxu0 %v675
    %v1081 = vpop.f32.mrf.mxu0
    %v1082 = vadd.f32 %v969, %v1081
    %1083 = vmatmul.f32.gmra.mxu0 %v677
    %v1084 = vpop.f32.mrf.mxu0
    %v1085 = vadd.f32 %v972, %v1084
    %1086 = vmatmul.f32.gmra.mxu0 %v679
    %v1087 = vpop.f32.mrf.mxu0
    %v1088 = vadd.f32 %v975, %v1087
    %1089 = vmatmul.f32.gmra.mxu0 %v681
    %v1090 = vpop.f32.mrf.mxu0
    %v1091 = vadd.f32 %v978, %v1090
    %1092 = vmatmul.f32.gmra.mxu0 %v683
    %v1093 = vpop.f32.mrf.mxu0
    %v1094 = vadd.f32 %v981, %v1093
    %1095 = vmatmul.f32.gmra.mxu0 %v685
    %v1096 = vpop.f32.mrf.mxu0
    %v1097 = vadd.f32 %v984, %v1096
    %1098 = vmatmul.f32.gmra.mxu0 %v687
    %v1099 = vpop.f32.mrf.mxu0
    %v1100 = vadd.f32 %v987, %v1099
    %1101 = vmatmul.f32.gmra.mxu0 %v689
    %v1102 = vpop.f32.mrf.mxu0
    %v1103 = vadd.f32 %v990, %v1102
    %1104 = vmatmul.f32.gmra.mxu0 %v691
    %v1105 = vpop.f32.mrf.mxu0
    %v1106 = vadd.f32 %v993, %v1105
    %1107 = vmatmul.f32.gmra.mxu0 %v693
    %v1108 = vpop.f32.mrf.mxu0
    %v1109 = vadd.f32 %v996, %v1108
    %1110 = vmatmul.f32.gmra.mxu0 %v695
    %v1111 = vpop.f32.mrf.mxu0
    %v1112 = vadd.f32 %v999, %v1111
    %1113 = vdwg.mxu0
    %v1114 = vmax.f32 %v1019, 0.0
    %v1115 = vmax.f32 %v1022, 0.0
    %v1116 = vmax.f32 %v1025, 0.0
    %v1117 = vmax.f32 %v1028, 0.0
    %v1118 = vmax.f32 %v1031, 0.0
    %v1119 = vmax.f32 %v1034, 0.0
    %v1120 = vmax.f32 %v1037, 0.0
    %v1121 = vmax.f32 %v1040, 0.0
    %v1122 = vmax.f32 %v1043, 0.0
    %v1123 = vmax.f32 %v1046, 0.0
    %v1124 = vmax.f32 %v1049, 0.0
    %v1125 = vmax.f32 %v1052, 0.0
    %v1126 = vmax.f32 %v1055, 0.0
    %v1127 = vmax.f32 %v1058, 0.0
    %v1128 = vmax.f32 %v1061, 0.0
    %v1129 = vmax.f32 %v1064, 0.0
    %v1130 = vmax.f32 %v1067, 0.0
    %v1131 = vmax.f32 %v1070, 0.0
    %v1132 = vmax.f32 %v1073, 0.0
    %v1133 = vmax.f32 %v1076, 0.0
    %v1134 = vmax.f32 %v1079, 0.0
    %v1135 = vmax.f32 %v1082, 0.0
    %v1136 = vmax.f32 %v1085, 0.0
    %v1137 = vmax.f32 %v1088, 0.0
    %v1138 = vmax.f32 %v1091, 0.0
    %v1139 = vmax.f32 %v1094, 0.0
    %v1140 = vmax.f32 %v1097, 0.0
    %v1141 = vmax.f32 %v1100, 0.0
    %v1142 = vmax.f32 %v1103, 0.0
    %v1143 = vmax.f32 %v1106, 0.0
    %v1144 = vmax.f32 %v1109, 0.0
    %v1145 = vmax.f32 %v1112, 0.0
    %v1146 = vld [vmem:[%s7] sm:$0x3]
    %v1147 = vld [vmem:[#allocation2] sm:$0x1]
    %1149 = vset.pattern.permute.xlu0 0
    %1150 = vperm.xlu0 %1149, %v1147
    %v1151 = vpop.permute.xlu0 %1150
    %v1153 = vperm.slane %v1151, 0
    %v1155 = vperm.slane %v1146, 0
    %v1156 = vperm.slane %v1146, 1
    %1159 = vmatpush.msra.mxu0 %v1129
    %1160 = vmatpush.msra.mxu0 %v1128
    %1161 = vmatpush.msra.mxu0 %v1127
    %1162 = vmatpush.msra.mxu0 %v1126
    %1163 = vmatpush.msra.mxu0 %v1125
    %1164 = vmatpush.msra.mxu0 %v1124
    %1165 = vmatpush.msra.mxu0 %v1123
    %1166 = vmatpush.msra.mxu0 %v1122
    %1167 = vmatpush.msra.mxu0 %v1121
    %1168 = vmatpush.msra.mxu0 %v1120
    %1169 = vmatpush.msra.mxu0 %v1119
    %1170 = vmatpush.msra.mxu0 %v1118
    %1171 = vmatpush.msra.mxu0 %v1117
    %1172 = vmatpush.msra.mxu0 %v1116
    %1173 = vmatpush.msra.mxu0 %v1115
    %1174 = vmatpush.msra.mxu0 %v1114
    %1175 = vmatmul.f32.gmra.mxu0 %v1155
    %v1176 = vpop.f32.mrf.mxu0
    %v1177 = vadd.f32 %v1153, %v1176
    %1178 = vdwg.mxu0
    %1179 = vmatpush.msra.mxu0 %v1145
    %1180 = vmatpush.msra.mxu0 %v1144
    %1181 = vmatpush.msra.mxu0 %v1143
    %1182 = vmatpush.msra.mxu0 %v1142
    %1183 = vmatpush.msra.mxu0 %v1141
    %1184 = vmatpush.msra.mxu0 %v1140
    %1185 = vmatpush.msra.mxu0 %v1139
    %1186 = vmatpush.msra.mxu0 %v1138
    %1187 = vmatpush.msra.mxu0 %v1137
    %1188 = vmatpush.msra.mxu0 %v1136
    %1189 = vmatpush.msra.mxu0 %v1135
    %1190 = vmatpush.msra.mxu0 %v1134
    %1191 = vmatpush.msra.mxu0 %v1133
    %1192 = vmatpush.msra.mxu0 %v1132
    %1193 = vmatpush.msra.mxu0 %v1131
    %1194 = vmatpush.msra.mxu0 %v1130
    %1195 = vmatmul.f32.gmra.mxu0 %v1156
    %v1196 = vpop.f32.mrf.mxu0
    %v1197 = vadd.f32 %v1177, %v1196
    %1198 = vdwg.mxu0
    %1199 = vst [vmem:[#allocation3] sm:$0x1] %v1197
    // Predicated region
    $region38: #{tpu_custom_call.1} parent=1 // pred_check
      _
    $region39: #{tpu_custom_call.1} parent=1 // pred_check_branch
      %1201 = sbr.rel (0) target = $region41
    $region40: #{tpu_custom_call.1} parent=1 // pred_region
      %1203 = vsyncadd [#allocation4], 0
      %s1205 = sshll.u32 [#allocation3], 4
      %s1206 = int_to_ptr.vmem [resolvable:$true] %s1205
      %s1207 = sshll.u32 %s9, 4
      %s1208 = int_to_ptr.hbm [resolvable:$true] %s1207
      %1210 = dma.vmem_to_hbm [thread:$0]  %s1206, 16, %s1208, [#allocation4]
    $region41: #{tpu_custom_call.1} parent=1 // pred_fallthru
      _
    // Predicated region
    $region42: #{tpu_custom_call.1} parent=1 // pred_check
      _
    $region43: #{tpu_custom_call.1} parent=1 // pred_check_branch
      %1212 = sbr.rel (0) target = $region45
    $region44: #{tpu_custom_call.1} parent=1 // pred_region
      %1214 = dma.done [#allocation4], 16
    $region45: #{tpu_custom_call.1} parent=1 // pred_fallthru
      _
    %1215 = vsyncpa [#allocation4], 1

</llo_original>
